<compile_context>
chip_gen: v5e
topology: v5e:2x2
jax: 0.10.0
libtpu: 0.0.40
codegen_flags: <defaults>
</compile_context>

<pallas_src>
import jax
import jax.numpy as jnp
from jax.experimental import pallas as pl
from jax.experimental.pallas import tpu as pltpu


def mlp_kernel(x_ref, w1_ref, b1_ref, w2_ref, b2_ref, o_ref):
    # hidden = relu(x @ W1 + b1); W1 is pre-transposed/padded to [F, H_pad].
    h = jnp.dot(x_ref[...], w1_ref[...], preferred_element_type=jnp.float32)
    h = jnp.maximum(h + b1_ref[...], 0.0)            # b1 is [1, H_pad]

    # out = hidden @ W2 + b2; W2 is pre-transposed/padded to [H_pad, O_pad].
    y = jnp.dot(h, w2_ref[...], preferred_element_type=jnp.float32)
    o_ref[...] = (y + b2_ref[...]).astype(o_ref.dtype)   # b2 is [1, O_pad]


def _round_up(n, m):
    return ((n + m - 1) // m) * m


def net_forward(x, w1, b1, w2, b2, *, batch_tile=512):
    """x: [B, F], w1: [H, F], b1: [H], w2: [O, H], b2: [O]  (PyTorch layout)."""
    B, F = x.shape
    H = w1.shape[0]
    O = w2.shape[0]

    # Lane-dense padded sizes for the hidden / output dims (multiples of 128).
    H_pad = _round_up(H, 128)
    O_pad = _round_up(O, 128)

    # Batch tile: one block if the batch is small (removes grid overhead),
    # otherwise 512-row tiles.  Always a multiple of 8 (f32 sublane).
    B8 = _round_up(B, 8)
    TB = B8 if B8 <= batch_tile else batch_tile
    B_pad = _round_up(B, TB)
    if B_pad != B:
        x = jnp.pad(x, ((0, B_pad - B), (0, 0)))

    # One-time wrapper-side weight prep (tiny, <2 KB each):
    #   W1^T zero-padded along H, b1 zero-padded  -> padded hidden cols stay 0
    #   W2^T zero-padded along H (rows) and O (cols), b2 zero-padded.
    w1_t = jnp.pad(jnp.transpose(w1), ((0, 0), (0, H_pad - H)))       # [F, H_pad]
    b1_p = jnp.pad(b1, (0, H_pad - H)).reshape(1, H_pad)              # [1, H_pad]
    w2_t = jnp.pad(jnp.transpose(w2), ((0, H_pad - H), (0, O_pad - O)))  # [H_pad, O_pad]
    b2_p = jnp.pad(b2, (0, O_pad - O)).reshape(1, O_pad)              # [1, O_pad]

    out = pl.pallas_call(
        mlp_kernel,
        out_shape=jax.ShapeDtypeStruct((B_pad, O_pad), x.dtype),
        grid=(B_pad // TB,),
        in_specs=[
            pl.BlockSpec((TB, F), lambda i: (i, 0)),        # x: tiled over batch
            pl.BlockSpec((F, H_pad), lambda i: (0, 0)),     # W1^T: resident
            pl.BlockSpec((1, H_pad), lambda i: (0, 0)),     # b1: resident
            pl.BlockSpec((H_pad, O_pad), lambda i: (0, 0)),  # W2^T: resident
            pl.BlockSpec((1, O_pad), lambda i: (0, 0)),     # b2: resident
        ],
        out_specs=pl.BlockSpec((TB, O_pad), lambda i: (i, 0)),
        compiler_params=pltpu.CompilerParams(
            dimension_semantics=("parallel",),
        ),
    )(x, w1_t, b1_p, w2_t, b2_p)

    # Drop padded batch rows and padded output lanes.
    return out[:B, :O]


if __name__ == "__main__":
    # Shapes implied by the module: n_feature=16, n_hidden=32, n_output=8.
    B, n_feature, n_hidden, n_output = 256, 16, 32, 8

    key = jax.random.PRNGKey(0)
    kx, kw1, kb1, kw2, kb2 = jax.random.split(key, 5)

    x = jax.random.normal(kx, (B, n_feature), dtype=jnp.float32)
    # Deterministic parameter init (PyTorch-style uniform bounds, synthetic).
    bound1 = 1.0 / (n_feature ** 0.5)
    w1 = jax.random.uniform(kw1, (n_hidden, n_feature), jnp.float32, -bound1, bound1)
    b1 = jax.random.uniform(kb1, (n_hidden,), jnp.float32, -bound1, bound1)
    bound2 = 1.0 / (n_hidden ** 0.5)
    w2 = jax.random.uniform(kw2, (n_output, n_hidden), jnp.float32, -bound2, bound2)
    b2 = jax.random.uniform(kb2, (n_output,), jnp.float32, -bound2, bound2)

    out = net_forward(x, w1, b1, w2, b2)
    jax.block_until_ready(out)

    # Cross-check against plain-JAX reference of the PyTorch forward.
    ref = jnp.maximum(x @ w1.T + b1, 0.0) @ w2.T + b2
    assert out.shape == (B, n_output)
    assert jnp.allclose(out, ref, atol=1e-5, rtol=1e-5)

    print("KERNEL_OK")
</pallas_src>

<mosaic_0001>
module attributes {stable_mosaic.version = 11 : i64} {
  func.func @mlp_kernel(%arg0: i32, %arg1: memref<256x16xf32, #tpu.memory_space<vmem>>, %arg2: memref<16x128xf32, #tpu.memory_space<vmem>>, %arg3: memref<1x128xf32, #tpu.memory_space<vmem>>, %arg4: memref<128x128xf32, #tpu.memory_space<vmem>>, %arg5: memref<1x128xf32, #tpu.memory_space<vmem>>, %arg6: memref<256x128xf32, #tpu.memory_space<vmem>>) attributes {dimension_semantics = [#tpu.dimension_semantics<parallel>], iteration_bounds = array<i64: 1>, scalar_prefetch = 0 : i64, scratch_operands = 0 : i64, tpu.core_type = #tpu.core_type<tc>, window_params = [{transform_indices = @transform_0, window_bounds = array<i64: 256, 16>}, {pipeline_mode = #tpu.pipeline_mode<synchronous>, transform_indices = @transform_1, window_bounds = array<i64: 16, 128>}, {pipeline_mode = #tpu.pipeline_mode<synchronous>, transform_indices = @transform_2, window_bounds = array<i64: 1, 128>}, {pipeline_mode = #tpu.pipeline_mode<synchronous>, transform_indices = @transform_3, window_bounds = array<i64: 128, 128>}, {pipeline_mode = #tpu.pipeline_mode<synchronous>, transform_indices = @transform_4, window_bounds = array<i64: 1, 128>}, {transform_indices = @transform_5, window_bounds = array<i64: 256, 128>}]} {
    %c0 = arith.constant 0 : index
    %c0_0 = arith.constant 0 : index
    %0 = vector.load %arg1[%c0, %c0_0] : memref<256x16xf32, #tpu.memory_space<vmem>>, vector<256x16xf32>
    %c0_1 = arith.constant 0 : index
    %c0_2 = arith.constant 0 : index
    %1 = vector.load %arg2[%c0_1, %c0_2] : memref<16x128xf32, #tpu.memory_space<vmem>>, vector<16x128xf32>
    %cst = arith.constant dense<0.000000e+00> : vector<256x128xf32>
    %2 = tpu.matmul %0, %1, %cst {dimension_numbers = #tpu.dot_dimension_numbers<[1], [0], [0], [1], [0, 0, 1, 1], [], []>} : vector<256x16xf32>, vector<16x128xf32>, vector<256x128xf32> -> vector<256x128xf32>
    %c0_3 = arith.constant 0 : index
    %c0_4 = arith.constant 0 : index
    %3 = vector.load %arg3[%c0_3, %c0_4] : memref<1x128xf32, #tpu.memory_space<vmem>>, vector<1x128xf32>
    %4 = vector.broadcast %3 : vector<1x128xf32> to vector<256x128xf32>
    %5 = arith.addf %2, %4 : vector<256x128xf32>
    %cst_5 = arith.constant 0.000000e+00 : f32
    %6 = vector.broadcast %cst_5 : f32 to vector<256x128xf32>
    %7 = arith.maximumf %5, %6 : vector<256x128xf32>
    %c0_6 = arith.constant 0 : index
    %c0_7 = arith.constant 0 : index
    %8 = vector.load %arg4[%c0_6, %c0_7] : memref<128x128xf32, #tpu.memory_space<vmem>>, vector<128x128xf32>
    %cst_8 = arith.constant dense<0.000000e+00> : vector<256x128xf32>
    %9 = tpu.matmul %7, %8, %cst_8 {dimension_numbers = #tpu.dot_dimension_numbers<[1], [0], [0], [1], [0, 0, 1, 1], [], []>} : vector<256x128xf32>, vector<128x128xf32>, vector<256x128xf32> -> vector<256x128xf32>
    %c0_9 = arith.constant 0 : index
    %c0_10 = arith.constant 0 : index
    %10 = vector.load %arg5[%c0_9, %c0_10] : memref<1x128xf32, #tpu.memory_space<vmem>>, vector<1x128xf32>
    %11 = vector.broadcast %10 : vector<1x128xf32> to vector<256x128xf32>
    %12 = arith.addf %9, %11 : vector<256x128xf32>
    %c0_11 = arith.constant 0 : index
    %c0_12 = arith.constant 0 : index
    %13 = vector.load %arg6[%c0_11, %c0_12] : memref<256x128xf32, #tpu.memory_space<vmem>>, vector<256x128xf32>
    tpu.vector_store %arg6[%c0_11, %c0_12], %12 {strides = array<i32>} : memref<256x128xf32, #tpu.memory_space<vmem>>, vector<256x128xf32>,
    return
  }
  func.func @transform_0(%arg0: i32) -> (i32, i32) {
    %c0_i32 = arith.constant 0 : i32
    %c0_i32_0 = arith.constant 0 : i32
    return %arg0, %c0_i32 : i32, i32
  }
  func.func @transform_1(%arg0: i32) -> (i32, i32) {
    %c0_i32 = arith.constant 0 : i32
    %c0_i32_0 = arith.constant 0 : i32
    %c0_i32_1 = arith.constant 0 : i32
    return %c0_i32, %c0_i32_0 : i32, i32
  }
  func.func @transform_2(%arg0: i32) -> (i32, i32) {
    %c0_i32 = arith.constant 0 : i32
    %c0_i32_0 = arith.constant 0 : i32
    %c0_i32_1 = arith.constant 0 : i32
    return %c0_i32, %c0_i32_0 : i32, i32
  }
  func.func @transform_3(%arg0: i32) -> (i32, i32) {
    %c0_i32 = arith.constant 0 : i32
    %c0_i32_0 = arith.constant 0 : i32
    %c0_i32_1 = arith.constant 0 : i32
    return %c0_i32, %c0_i32_0 : i32, i32
  }
  func.func @transform_4(%arg0: i32) -> (i32, i32) {
    %c0_i32 = arith.constant 0 : i32
    %c0_i32_0 = arith.constant 0 : i32
    %c0_i32_1 = arith.constant 0 : i32
    return %c0_i32, %c0_i32_0 : i32, i32
  }
  func.func @transform_5(%arg0: i32) -> (i32, i32) {
    %c0_i32 = arith.constant 0 : i32
    %c0_i32_0 = arith.constant 0 : i32
    return %arg0, %c0_i32 : i32, i32
  }
}

</mosaic_0001>

<llo_original>
// kernel: tpu_custom_call.1
$region0: #{tpu_custom_call.1}
  #allocation0 [shape = 'u32[]', space=smem, size = 0x4, offset = 0x4, fixed_abs, tag = 'smem constant byte address 0x4 - core index']
  #allocation1 [shape = 'u32[72,128]{1,0:T(1,128)}', space=vmem, size = 0x9000, scoped, tag = 'internal scratch']
  %s0 = inlined_call_operand.vmem [shape: f32[256,16], index: 0, kind: input, shape index: {}]
  %s1 = inlined_call_operand.vmem [shape: f32[16,128], index: 1, kind: input, shape index: {}]
  %s2 = inlined_call_operand.vmem [shape: f32[1,128], index: 2, kind: input, shape index: {}]
  %s3 = inlined_call_operand.vmem [shape: f32[128,128], index: 3, kind: input, shape index: {}]
  %s4 = inlined_call_operand.vmem [shape: f32[1,128], index: 4, kind: input, shape index: {}]
  %s5 = inlined_call_operand.hbm [shape: f32[256,128], index: 5, kind: output, shape index: {}]
  %s6 = sld [smem:[#allocation0]]
  $region30: #{tpu_custom_call.1} parent=0
    _
  %s8 = ssub.s32 1, %s6
  %s9 = scalar_select 0, %s8, %s6
  $region1: #{tpu_custom_call.1} parent=0
    #allocation2 [shape = 'u8[131072]{0}', space=vmem, size = 0x20000, scoped, tag = 'output window, operand 0, single buffered']
    #allocation3 [shape = 's32[1]{0}', space=sflag, size = 0x4, scoped, tag = 'scoped memory for tpu_custom_call.1']
    %10 = vsyncpa [#allocation3], 0
    // Predicated region
    $region2: #{tpu_custom_call.1} parent=1 // pred_check
      _
    $region3: #{tpu_custom_call.1} parent=1 // pred_check_branch
      %12 = sbr.rel (0) target = $region5
    $region4: #{tpu_custom_call.1} parent=1 // pred_region
      _
    $region5: #{tpu_custom_call.1} parent=1 // pred_fallthru
      _
    // Predicated region
    $region6: #{tpu_custom_call.1} parent=1 // pred_check
      _
    $region7: #{tpu_custom_call.1} parent=1 // pred_check_branch
      %14 = sbr.rel (0) target = $region9
    $region8: #{tpu_custom_call.1} parent=1 // pred_region
      _
    $region9: #{tpu_custom_call.1} parent=1 // pred_fallthru
      _
    // Predicated region
    $region10: #{tpu_custom_call.1} parent=1 // pred_check
      _
    $region11: #{tpu_custom_call.1} parent=1 // pred_check_branch
      %16 = sbr.rel (0) target = $region13
    $region12: #{tpu_custom_call.1} parent=1 // pred_region
      _
    $region13: #{tpu_custom_call.1} parent=1 // pred_fallthru
      _
    // Predicated region
    $region14: #{tpu_custom_call.1} parent=1 // pred_check
      _
    $region15: #{tpu_custom_call.1} parent=1 // pred_check_branch
      %18 = sbr.rel (0) target = $region17
    $region16: #{tpu_custom_call.1} parent=1 // pred_region
      _
    $region17: #{tpu_custom_call.1} parent=1 // pred_fallthru
      _
    // Predicated region
    $region18: #{tpu_custom_call.1} parent=1 // pred_check
      _
    $region19: #{tpu_custom_call.1} parent=1 // pred_check_branch
      %20 = sbr.rel (0) target = $region21
    $region20: #{tpu_custom_call.1} parent=1 // pred_region
      _
    $region21: #{tpu_custom_call.1} parent=1 // pred_fallthru
      _
    %v21 = vld [vmem:[%s0] sm:$0xff]
    %v22 = vld [vmem:[%s0 + $0x8] sm:$0xff]
    %v23 = vld [vmem:[%s0 + $0x10] sm:$0xff]
    %v24 = vld [vmem:[%s0 + $0x18] sm:$0xff]
    %v25 = vld [vmem:[%s0 + $0x20] sm:$0xff]
    %v26 = vld [vmem:[%s0 + $0x28] sm:$0xff]
    %v27 = vld [vmem:[%s0 + $0x30] sm:$0xff]
    %v28 = vld [vmem:[%s0 + $0x38] sm:$0xff]
    %v29 = vld [vmem:[%s0 + $0x40] sm:$0xff]
    %v30 = vld [vmem:[%s0 + $0x48] sm:$0xff]
    %v31 = vld [vmem:[%s0 + $0x50] sm:$0xff]
    %v32 = vld [vmem:[%s0 + $0x58] sm:$0xff]
    %v33 = vld [vmem:[%s0 + $0x60] sm:$0xff]
    %v34 = vld [vmem:[%s0 + $0x68] sm:$0xff]
    %v35 = vld [vmem:[%s0 + $0x70] sm:$0xff]
    %v36 = vld [vmem:[%s0 + $0x78] sm:$0xff]
    %v37 = vld [vmem:[%s0 + $0x80] sm:$0xff]
    %v38 = vld [vmem:[%s0 + $0x88] sm:$0xff]
    %v39 = vld [vmem:[%s0 + $0x90] sm:$0xff]
    %v40 = vld [vmem:[%s0 + $0x98] sm:$0xff]
    %v41 = vld [vmem:[%s0 + $0xa0] sm:$0xff]
    %v42 = vld [vmem:[%s0 + $0xa8] sm:$0xff]
    %v43 = vld [vmem:[%s0 + $0xb0] sm:$0xff]
    %v44 = vld [vmem:[%s0 + $0xb8] sm:$0xff]
    %v45 = vld [vmem:[%s0 + $0xc0] sm:$0xff]
    %v46 = vld [vmem:[%s0 + $0xc8] sm:$0xff]
    %v47 = vld [vmem:[%s0 + $0xd0] sm:$0xff]
    %v48 = vld [vmem:[%s0 + $0xd8] sm:$0xff]
    %v49 = vld [vmem:[%s0 + $0xe0] sm:$0xff]
    %v50 = vld [vmem:[%s0 + $0xe8] sm:$0xff]
    %v51 = vld [vmem:[%s0 + $0xf0] sm:$0xff]
    %v52 = vld [vmem:[%s0 + $0xf8] sm:$0xff]
    %v53 = vld [vmem:[%s1] sm:$0xff]
    %v54 = vld [vmem:[%s1 + $0x8] sm:$0xff]
    %v55 = vld [vmem:[%s2] sm:$0x1]
    %v57 = vperm.slane %v55, 0
    %vm59 = vcmask 130048
    %v61 = vsel %vm59, %v21, 0
    %v64 = vsel %vm59, %v22, 0
    %v67 = vsel %vm59, %v23, 0
    %v70 = vsel %vm59, %v24, 0
    %v73 = vsel %vm59, %v25, 0
    %v76 = vsel %vm59, %v26, 0
    %v79 = vsel %vm59, %v27, 0
    %v82 = vsel %vm59, %v28, 0
    %v85 = vsel %vm59, %v29, 0
    %v88 = vsel %vm59, %v30, 0
    %v91 = vsel %vm59, %v31, 0
    %v94 = vsel %vm59, %v32, 0
    %v97 = vsel %vm59, %v33, 0
    %v100 = vsel %vm59, %v34, 0
    %v103 = vsel %vm59, %v35, 0
    %v106 = vsel %vm59, %v36, 0
    %v109 = vsel %vm59, %v37, 0
    %v112 = vsel %vm59, %v38, 0
    %v115 = vsel %vm59, %v39, 0
    %v118 = vsel %vm59, %v40, 0
    %v121 = vsel %vm59, %v41, 0
    %v124 = vsel %vm59, %v42, 0
    %v127 = vsel %vm59, %v43, 0
    %v130 = vsel %vm59, %v44, 0
    %v133 = vsel %vm59, %v45, 0
    %v136 = vsel %vm59, %v46, 0
    %v139 = vsel %vm59, %v47, 0
    %v142 = vsel %vm59, %v48, 0
    %v145 = vsel %vm59, %v49, 0
    %v148 = vsel %vm59, %v50, 0
    %v151 = vsel %vm59, %v51, 0
    %v154 = vsel %vm59, %v52, 0
    %156 = vmatpush.msra.mxu0 0.0
    %157 = vmatpush.msra.mxu0 0.0
    %158 = vmatpush.msra.mxu0 0.0
    %159 = vmatpush.msra.mxu0 0.0
    %160 = vmatpush.msra.mxu0 0.0
    %161 = vmatpush.msra.mxu0 0.0
    %162 = vmatpush.msra.mxu0 0.0
    %163 = vmatpush.msra.mxu0 0.0
    %164 = vmatpush.msra.mxu0 0.0
    %165 = vmatpush.msra.mxu0 0.0
    %166 = vmatpush.msra.mxu0 0.0
    %167 = vmatpush.msra.mxu0 0.0
    %168 = vmatpush.msra.mxu0 0.0
    %169 = vmatpush.msra.mxu0 0.0
    %170 = vmatpush.msra.mxu0 %v54
    %171 = vmatpush.msra.mxu0 %v53
    %172 = vmatmul.f32.gmra.mxu0 %v61
    %v173 = vpop.f32.mrf.mxu0
    %v174 = vadd.f32 %v57, %v173
    %175 = vmatmul.f32.gmra.mxu0 %v64
    %v176 = vpop.f32.mrf.mxu0
    %v177 = vadd.f32 %v57, %v176
    %178 = vmatmul.f32.gmra.mxu0 %v67
    %v179 = vpop.f32.mrf.mxu0
    %v180 = vadd.f32 %v57, %v179
    %181 = vmatmul.f32.gmra.mxu0 %v70
    %v182 = vpop.f32.mrf.mxu0
    %v183 = vadd.f32 %v57, %v182
    %184 = vmatmul.f32.gmra.mxu0 %v73
    %v185 = vpop.f32.mrf.mxu0
    %v186 = vadd.f32 %v57, %v185
    %187 = vmatmul.f32.gmra.mxu0 %v76
    %v188 = vpop.f32.mrf.mxu0
    %v189 = vadd.f32 %v57, %v188
    %190 = vmatmul.f32.gmra.mxu0 %v79
    %v191 = vpop.f32.mrf.mxu0
    %v192 = vadd.f32 %v57, %v191
    %193 = vmatmul.f32.gmra.mxu0 %v82
    %v194 = vpop.f32.mrf.mxu0
    %v195 = vadd.f32 %v57, %v194
    %196 = vmatmul.f32.gmra.mxu0 %v85
    %v197 = vpop.f32.mrf.mxu0
    %v198 = vadd.f32 %v57, %v197
    %199 = vmatmul.f32.gmra.mxu0 %v88
    %v200 = vpop.f32.mrf.mxu0
    %v201 = vadd.f32 %v57, %v200
    %202 = vmatmul.f32.gmra.mxu0 %v91
    %v203 = vpop.f32.mrf.mxu0
    %v204 = vadd.f32 %v57, %v203
    %205 = vmatmul.f32.gmra.mxu0 %v94
    %v206 = vpop.f32.mrf.mxu0
    %v207 = vadd.f32 %v57, %v206
    %208 = vmatmul.f32.gmra.mxu0 %v97
    %v209 = vpop.f32.mrf.mxu0
    %v210 = vadd.f32 %v57, %v209
    %211 = vmatmul.f32.gmra.mxu0 %v100
    %v212 = vpop.f32.mrf.mxu0
    %v213 = vadd.f32 %v57, %v212
    %214 = vmatmul.f32.gmra.mxu0 %v103
    %v215 = vpop.f32.mrf.mxu0
    %v216 = vadd.f32 %v57, %v215
    %217 = vmatmul.f32.gmra.mxu0 %v106
    %v218 = vpop.f32.mrf.mxu0
    %v219 = vadd.f32 %v57, %v218
    %220 = vmatmul.f32.gmra.mxu0 %v109
    %v221 = vpop.f32.mrf.mxu0
    %v222 = vadd.f32 %v57, %v221
    %223 = vmatmul.f32.gmra.mxu0 %v112
    %v224 = vpop.f32.mrf.mxu0
    %v225 = vadd.f32 %v57, %v224
    %226 = vmatmul.f32.gmra.mxu0 %v115
    %v227 = vpop.f32.mrf.mxu0
    %v228 = vadd.f32 %v57, %v227
    %229 = vmatmul.f32.gmra.mxu0 %v118
    %v230 = vpop.f32.mrf.mxu0
    %v231 = vadd.f32 %v57, %v230
    %232 = vmatmul.f32.gmra.mxu0 %v121
    %v233 = vpop.f32.mrf.mxu0
    %v234 = vadd.f32 %v57, %v233
    %235 = vmatmul.f32.gmra.mxu0 %v124
    %v236 = vpop.f32.mrf.mxu0
    %v237 = vadd.f32 %v57, %v236
    %238 = vmatmul.f32.gmra.mxu0 %v127
    %v239 = vpop.f32.mrf.mxu0
    %v240 = vadd.f32 %v57, %v239
    %241 = vmatmul.f32.gmra.mxu0 %v130
    %v242 = vpop.f32.mrf.mxu0
    %v243 = vadd.f32 %v57, %v242
    %244 = vmatmul.f32.gmra.mxu0 %v133
    %v245 = vpop.f32.mrf.mxu0
    %v246 = vadd.f32 %v57, %v245
    %247 = vmatmul.f32.gmra.mxu0 %v136
    %v248 = vpop.f32.mrf.mxu0
    %v249 = vadd.f32 %v57, %v248
    %250 = vmatmul.f32.gmra.mxu0 %v139
    %v251 = vpop.f32.mrf.mxu0
    %v252 = vadd.f32 %v57, %v251
    %253 = vmatmul.f32.gmra.mxu0 %v142
    %v254 = vpop.f32.mrf.mxu0
    %v255 = vadd.f32 %v57, %v254
    %256 = vmatmul.f32.gmra.mxu0 %v145
    %v257 = vpop.f32.mrf.mxu0
    %v258 = vadd.f32 %v57, %v257
    %259 = vmatmul.f32.gmra.mxu0 %v148
    %v260 = vpop.f32.mrf.mxu0
    %v261 = vadd.f32 %v57, %v260
    %262 = vmatmul.f32.gmra.mxu0 %v151
    %v263 = vpop.f32.mrf.mxu0
    %v264 = vadd.f32 %v57, %v263
    %265 = vmatmul.f32.gmra.mxu0 %v154
    %v266 = vpop.f32.mrf.mxu0
    %v267 = vadd.f32 %v57, %v266
    %268 = vdwg.mxu0
    %v269 = vmax.f32 %v174, 0.0
    %v270 = vmax.f32 %v177, 0.0
    %v271 = vmax.f32 %v180, 0.0
    %v272 = vmax.f32 %v183, 0.0
    %v273 = vmax.f32 %v186, 0.0
    %v274 = vmax.f32 %v189, 0.0
    %v275 = vmax.f32 %v192, 0.0
    %v276 = vmax.f32 %v195, 0.0
    %v277 = vmax.f32 %v198, 0.0
    %v278 = vmax.f32 %v201, 0.0
    %v279 = vmax.f32 %v204, 0.0
    %v280 = vmax.f32 %v207, 0.0
    %v281 = vmax.f32 %v210, 0.0
    %v282 = vmax.f32 %v213, 0.0
    %v283 = vmax.f32 %v216, 0.0
    %v284 = vmax.f32 %v219, 0.0
    %v285 = vmax.f32 %v222, 0.0
    %v286 = vmax.f32 %v225, 0.0
    %v287 = vmax.f32 %v228, 0.0
    %v288 = vmax.f32 %v231, 0.0
    %v289 = vmax.f32 %v234, 0.0
    %v290 = vmax.f32 %v237, 0.0
    %v291 = vmax.f32 %v240, 0.0
    %v292 = vmax.f32 %v243, 0.0
    %v293 = vmax.f32 %v246, 0.0
    %v294 = vmax.f32 %v249, 0.0
    %v295 = vmax.f32 %v252, 0.0
    %v296 = vmax.f32 %v255, 0.0
    %v297 = vmax.f32 %v258, 0.0
    %v298 = vmax.f32 %v261, 0.0
    %v299 = vmax.f32 %v264, 0.0
    %v300 = vmax.f32 %v267, 0.0
    %v301 = vld [vmem:[%s3] sm:$0xff]
    %v302 = vld [vmem:[%s3 + $0x8] sm:$0xff]
    %v303 = vld [vmem:[%s3 + $0x10] sm:$0xff]
    %v304 = vld [vmem:[%s3 + $0x18] sm:$0xff]
    %v305 = vld [vmem:[%s3 + $0x20] sm:$0xff]
    %v306 = vld [vmem:[%s3 + $0x28] sm:$0xff]
    %v307 = vld [vmem:[%s3 + $0x30] sm:$0xff]
    %v308 = vld [vmem:[%s3 + $0x38] sm:$0xff]
    %v309 = vld [vmem:[%s3 + $0x40] sm:$0xff]
    %v310 = vld [vmem:[%s3 + $0x48] sm:$0xff]
    %v311 = vld [vmem:[%s3 + $0x50] sm:$0xff]
    %v312 = vld [vmem:[%s3 + $0x58] sm:$0xff]
    %v313 = vld [vmem:[%s3 + $0x60] sm:$0xff]
    %v314 = vld [vmem:[%s3 + $0x68] sm:$0xff]
    %v315 = vld [vmem:[%s3 + $0x70] sm:$0xff]
    %v316 = vld [vmem:[%s3 + $0x78] sm:$0xff]
    %v317 = vld [vmem:[%s4] sm:$0x1]
    %v319 = vperm.slane %v317, 0
    %321 = vmatpush.msra.mxu0 %v316
    %322 = vmatpush.msra.mxu0 %v315
    %323 = vmatpush.msra.mxu0 %v314
    %324 = vmatpush.msra.mxu0 %v313
    %325 = vmatpush.msra.mxu0 %v312
    %326 = vmatpush.msra.mxu0 %v311
    %327 = vmatpush.msra.mxu0 %v310
    %328 = vmatpush.msra.mxu0 %v309
    %329 = vmatpush.msra.mxu0 %v308
    %330 = vmatpush.msra.mxu0 %v307
    %331 = vmatpush.msra.mxu0 %v306
    %332 = vmatpush.msra.mxu0 %v305
    %333 = vmatpush.msra.mxu0 %v304
    %334 = vmatpush.msra.mxu0 %v303
    %335 = vmatpush.msra.mxu0 %v302
    %336 = vmatpush.msra.mxu0 %v301
    %337 = vmatmul.f32.gmra.mxu0 %v269
    %v338 = vpop.f32.mrf.mxu0
    %v339 = vadd.f32 %v319, %v338
    %340 = vmatmul.f32.gmra.mxu0 %v270
    %v341 = vpop.f32.mrf.mxu0
    %v342 = vadd.f32 %v319, %v341
    %343 = vmatmul.f32.gmra.mxu0 %v271
    %v344 = vpop.f32.mrf.mxu0
    %v345 = vadd.f32 %v319, %v344
    %346 = vmatmul.f32.gmra.mxu0 %v272
    %v347 = vpop.f32.mrf.mxu0
    %v348 = vadd.f32 %v319, %v347
    %349 = vmatmul.f32.gmra.mxu0 %v273
    %v350 = vpop.f32.mrf.mxu0
    %v351 = vadd.f32 %v319, %v350
    %352 = vmatmul.f32.gmra.mxu0 %v274
    %v353 = vpop.f32.mrf.mxu0
    %v354 = vadd.f32 %v319, %v353
    %355 = vmatmul.f32.gmra.mxu0 %v275
    %v356 = vpop.f32.mrf.mxu0
    %v357 = vadd.f32 %v319, %v356
    %358 = vmatmul.f32.gmra.mxu0 %v276
    %v359 = vpop.f32.mrf.mxu0
    %v360 = vadd.f32 %v319, %v359
    %361 = vmatmul.f32.gmra.mxu0 %v277
    %v362 = vpop.f32.mrf.mxu0
    %v363 = vadd.f32 %v319, %v362
    %364 = vmatmul.f32.gmra.mxu0 %v278
    %v365 = vpop.f32.mrf.mxu0
    %v366 = vadd.f32 %v319, %v365
    %367 = vmatmul.f32.gmra.mxu0 %v279
    %v368 = vpop.f32.mrf.mxu0
    %v369 = vadd.f32 %v319, %v368
    %370 = vmatmul.f32.gmra.mxu0 %v280
    %v371 = vpop.f32.mrf.mxu0
    %v372 = vadd.f32 %v319, %v371
    %373 = vmatmul.f32.gmra.mxu0 %v281
    %v374 = vpop.f32.mrf.mxu0
    %v375 = vadd.f32 %v319, %v374
    %376 = vmatmul.f32.gmra.mxu0 %v282
    %v377 = vpop.f32.mrf.mxu0
    %v378 = vadd.f32 %v319, %v377
    %379 = vmatmul.f32.gmra.mxu0 %v283
    %v380 = vpop.f32.mrf.mxu0
    %v381 = vadd.f32 %v319, %v380
    %382 = vmatmul.f32.gmra.mxu0 %v284
    %v383 = vpop.f32.mrf.mxu0
    %v384 = vadd.f32 %v319, %v383
    %385 = vmatmul.f32.gmra.mxu0 %v285
    %v386 = vpop.f32.mrf.mxu0
    %v387 = vadd.f32 %v319, %v386
    %388 = vmatmul.f32.gmra.mxu0 %v286
    %v389 = vpop.f32.mrf.mxu0
    %v390 = vadd.f32 %v319, %v389
    %391 = vmatmul.f32.gmra.mxu0 %v287
    %v392 = vpop.f32.mrf.mxu0
    %v393 = vadd.f32 %v319, %v392
    %394 = vmatmul.f32.gmra.mxu0 %v288
    %v395 = vpop.f32.mrf.mxu0
    %v396 = vadd.f32 %v319, %v395
    %397 = vmatmul.f32.gmra.mxu0 %v289
    %v398 = vpop.f32.mrf.mxu0
    %v399 = vadd.f32 %v319, %v398
    %400 = vmatmul.f32.gmra.mxu0 %v290
    %v401 = vpop.f32.mrf.mxu0
    %v402 = vadd.f32 %v319, %v401
    %403 = vmatmul.f32.gmra.mxu0 %v291
    %v404 = vpop.f32.mrf.mxu0
    %v405 = vadd.f32 %v319, %v404
    %406 = vmatmul.f32.gmra.mxu0 %v292
    %v407 = vpop.f32.mrf.mxu0
    %v408 = vadd.f32 %v319, %v407
    %409 = vmatmul.f32.gmra.mxu0 %v293
    %v410 = vpop.f32.mrf.mxu0
    %v411 = vadd.f32 %v319, %v410
    %412 = vmatmul.f32.gmra.mxu0 %v294
    %v413 = vpop.f32.mrf.mxu0
    %v414 = vadd.f32 %v319, %v413
    %415 = vmatmul.f32.gmra.mxu0 %v295
    %v416 = vpop.f32.mrf.mxu0
    %v417 = vadd.f32 %v319, %v416
    %418 = vmatmul.f32.gmra.mxu0 %v296
    %v419 = vpop.f32.mrf.mxu0
    %v420 = vadd.f32 %v319, %v419
    %421 = vmatmul.f32.gmra.mxu0 %v297
    %v422 = vpop.f32.mrf.mxu0
    %v423 = vadd.f32 %v319, %v422
    %424 = vmatmul.f32.gmra.mxu0 %v298
    %v425 = vpop.f32.mrf.mxu0
    %v426 = vadd.f32 %v319, %v425
    %427 = vmatmul.f32.gmra.mxu0 %v299
    %v428 = vpop.f32.mrf.mxu0
    %v429 = vadd.f32 %v319, %v428
    %430 = vmatmul.f32.gmra.mxu0 %v300
    %v431 = vpop.f32.mrf.mxu0
    %v432 = vadd.f32 %v319, %v431
    %433 = vdwg.mxu0
    %434 = vst [vmem:[#allocation2] sm:$0xff] %v339
    %435 = vst [vmem:[#allocation2 + $0x8] sm:$0xff] %v342
    %436 = vst [vmem:[#allocation2 + $0x10] sm:$0xff] %v345
    %437 = vst [vmem:[#allocation2 + $0x18] sm:$0xff] %v348
    %438 = vst [vmem:[#allocation2 + $0x20] sm:$0xff] %v351
    %439 = vst [vmem:[#allocation2 + $0x28] sm:$0xff] %v354
    %440 = vst [vmem:[#allocation2 + $0x30] sm:$0xff] %v357
    %441 = vst [vmem:[#allocation2 + $0x38] sm:$0xff] %v360
    %442 = vst [vmem:[#allocation2 + $0x40] sm:$0xff] %v363
    %443 = vst [vmem:[#allocation2 + $0x48] sm:$0xff] %v366
    %444 = vst [vmem:[#allocation2 + $0x50] sm:$0xff] %v369
    %445 = vst [vmem:[#allocation2 + $0x58] sm:$0xff] %v372
    %446 = vst [vmem:[#allocation2 + $0x60] sm:$0xff] %v375
    %447 = vst [vmem:[#allocation2 + $0x68] sm:$0xff] %v378
    %448 = vst [vmem:[#allocation2 + $0x70] sm:$0xff] %v381
    %449 = vst [vmem:[#allocation2 + $0x78] sm:$0xff] %v384
    %450 = vst [vmem:[#allocation2 + $0x80] sm:$0xff] %v387
    %451 = vst [vmem:[#allocation2 + $0x88] sm:$0xff] %v390
    %452 = vst [vmem:[#allocation2 + $0x90] sm:$0xff] %v393
    %453 = vst [vmem:[#allocation2 + $0x98] sm:$0xff] %v396
    %454 = vst [vmem:[#allocation2 + $0xa0] sm:$0xff] %v399
    %455 = vst [vmem:[#allocation2 + $0xa8] sm:$0xff] %v402
    %456 = vst [vmem:[#allocation2 + $0xb0] sm:$0xff] %v405
    %457 = vst [vmem:[#allocation2 + $0xb8] sm:$0xff] %v408
    %458 = vst [vmem:[#allocation2 + $0xc0] sm:$0xff] %v411
    %459 = vst [vmem:[#allocation2 + $0xc8] sm:$0xff] %v414
    %460 = vst [vmem:[#allocation2 + $0xd0] sm:$0xff] %v417
    %461 = vst [vmem:[#allocation2 + $0xd8] sm:$0xff] %v420
    %462 = vst [vmem:[#allocation2 + $0xe0] sm:$0xff] %v423
    %463 = vst [vmem:[#allocation2 + $0xe8] sm:$0xff] %v426
    %464 = vst [vmem:[#allocation2 + $0xf0] sm:$0xff] %v429
    %465 = vst [vmem:[#allocation2 + $0xf8] sm:$0xff] %v432
    // Predicated region
    $region22: #{tpu_custom_call.1} parent=1 // pred_check
      _
    $region23: #{tpu_custom_call.1} parent=1 // pred_check_branch
      %467 = sbr.rel (0) target = $region25
    $region24: #{tpu_custom_call.1} parent=1 // pred_region
      %469 = vsyncadd [#allocation3], 0
      %s470 = sshll.u32 [#allocation2], 4
      %s471 = int_to_ptr.vmem [resolvable:$true] %s470
      %s472 = sshll.u32 %s5, 4
      %s473 = int_to_ptr.hbm [resolvable:$true] %s472
      %478 = dma.vmem_to_hbm [thread:$0]  %s471, 4096, %s473, [#allocation3], 128, 128, 8
    $region25: #{tpu_custom_call.1} parent=1 // pred_fallthru
      _
    // Predicated region
    $region26: #{tpu_custom_call.1} parent=1 // pred_check
      _
    $region27: #{tpu_custom_call.1} parent=1 // pred_check_branch
      %480 = sbr.rel (0) target = $region29
    $region28: #{tpu_custom_call.1} parent=1 // pred_region
      %482 = dma.done [#allocation3], 4096
    $region29: #{tpu_custom_call.1} parent=1 // pred_fallthru
      _
    %483 = vsyncpa [#allocation3], 1

</llo_original>
